<compile_context>
chip_gen: v7x
topology: tpu7x:2x2x1
jax: 0.10.0
libtpu: 0.0.40
codegen_flags: <defaults>
</compile_context>

<pallas_src>
import functools

import jax
import jax.numpy as jnp
from jax.experimental import pallas as pl
from jax.experimental.pallas import tpu as pltpu


def _round_up(x: int, m: int) -> int:
    return ((x + m - 1) // m) * m


def _cdiv(a: int, b: int) -> int:
    return (a + b - 1) // b


def _critic_kernel(state_ref, action_ref, w1s_ref, w1a_ref, b1_ref,
                   w2_ref, b2_ref, w3t_ref, b3_ref, o_ref, *, compute_dtype):
    # Activation tiles: (TILE_B, state_dim) f32 and (TILE_B, action_dim) int32.
    s = state_ref[...].astype(compute_dtype)
    a = action_ref[...].astype(jnp.float32).astype(compute_dtype)  # torch: action.float()

    # Layer 1: fused concat expressed as a split matmul (state @ W1s + action @ W1a).
    # Accumulation + bias + ReLU in f32; MXU operands in `compute_dtype`.
    h1 = (jnp.dot(s, w1s_ref[...], preferred_element_type=jnp.float32)
          + jnp.dot(a, w1a_ref[...], preferred_element_type=jnp.float32)
          + b1_ref[...])
    h1 = jnp.maximum(h1, 0.0).astype(compute_dtype)

    # Layer 2.
    h2 = jnp.dot(h1, w2_ref[...], preferred_element_type=jnp.float32) + b2_ref[...]
    h2 = jnp.maximum(h2, 0.0).astype(compute_dtype)

    # Output layer: (1, Hp) contracted with (TILE_B, Hp) over Hp -> (1, TILE_B).
    # This is the A @ B^T MXU form (no large h2 transpose) and leaves the q
    # values lane-dense for unmasked vector stores.
    q = jax.lax.dot_general(
        w3t_ref[...], h2,
        dimension_numbers=(((1,), (1,)), ((), ())),
        preferred_element_type=jnp.float32)
    o_ref[...] = (q + b3_ref[0]).astype(o_ref.dtype)


def prepare_params(params, state_dim, *, compute_dtype=jnp.float32):
    """One-time parameter prep: split W1 (fused concat), pad hidden to a
    multiple of 128 lanes (numerics unchanged: padded lanes stay exactly 0
    through bias+ReLU), transpose w3 for the lane-dense output, optionally
    cast matmul operands to bf16.  Biases stay f32 (accumulation stays f32)."""
    w1, b1, w2, b2, w3, b3 = params
    hidden = w1.shape[1]
    hp = _round_up(hidden, 128)
    dh = hp - hidden

    w1s = jnp.pad(w1[:state_dim], ((0, 0), (0, dh))).astype(compute_dtype)  # (S,  Hp)
    w1a = jnp.pad(w1[state_dim:], ((0, 0), (0, dh))).astype(compute_dtype)  # (A,  Hp)
    b1p = jnp.pad(b1, ((0, 0), (0, dh)))                                    # (1,  Hp) f32
    w2p = jnp.pad(w2, ((0, dh), (0, dh))).astype(compute_dtype)             # (Hp, Hp)
    b2p = jnp.pad(b2, ((0, 0), (0, dh)))                                    # (1,  Hp) f32
    w3t = jnp.pad(w3.T, ((0, 0), (0, dh))).astype(compute_dtype)            # (1,  Hp)
    b3s = b3.reshape((1,)).astype(jnp.float32)                              # SMEM scalar
    return (w1s, w1a, b1p, w2p, b2p, w3t, b3s)


def action_value_critic_forward(state, action, prepared, *, tile_b=4096):
    """state: f32[B, state_dim], action: int[B, action_dim] -> f32[B, 1]."""
    w1s, w1a, b1p, w2p, b2p, w3t, b3s = prepared
    batch, state_dim = state.shape
    action_dim = action.shape[1]
    hp = w1s.shape[1]
    compute_dtype = w1s.dtype
    cbytes = 2 if compute_dtype == jnp.bfloat16 else 4

    # --- batch tiling -------------------------------------------------------
    # Multiple of 128, no bigger than half the (128-rounded) batch so v7x's
    # two TensorCores both get work, and at least 128.  No input padding:
    # the ragged last block is masked by Pallas.
    tile_b = max(128, min(int(tile_b), _round_up(_cdiv(batch, 2), 128)))
    num_tiles = _cdiv(batch, tile_b)

    # --- VMEM budget (lane-padded blocks, double-buffered) ------------------
    vmem_est = (
        2 * 2 * tile_b * 128 * 4          # state + action blocks (minor dim pads to 128 lanes)
        + 2 * 8 * tile_b * 4              # (1, tile_b) output block (pads to 8 sublanes)
        + 4 * tile_b * hp * 4             # h1/h2 intermediates + slack
        + 2 * (w1s.size + w1a.size + w2p.size + w3t.size) * cbytes
        + 2 * (b1p.size + b2p.size) * 4)
    vmem_limit = int(min(max(vmem_est * 3 // 2, 32 << 20), 64 << 20))

    # --- cost hint for the XLA scheduler -------------------------------------
    flops = 2 * batch * ((state_dim + action_dim) * hp + hp * hp + hp)
    bytes_accessed = (batch * (4 * state_dim + 4 * action_dim + 4)
                      + (w1s.size + w1a.size + w2p.size + w3t.size) * cbytes
                      + (b1p.size + b2p.size + 1) * 4)
    cost = pl.CostEstimate(flops=flops, transcendentals=0,
                           bytes_accessed=bytes_accessed)

    const = lambda i: (0, 0)   # weights: VMEM-resident across grid steps
    kernel = functools.partial(_critic_kernel, compute_dtype=compute_dtype)

    out = pl.pallas_call(
        kernel,
        out_shape=jax.ShapeDtypeStruct((1, batch), jnp.float32),
        grid=(num_tiles,),
        in_specs=[
            pl.BlockSpec((tile_b, state_dim), lambda i: (i, 0)),
            pl.BlockSpec((tile_b, action_dim), lambda i: (i, 0)),
            pl.BlockSpec((state_dim, hp), const),
            pl.BlockSpec((action_dim, hp), const),
            pl.BlockSpec((1, hp), const),
            pl.BlockSpec((hp, hp), const),
            pl.BlockSpec((1, hp), const),
            pl.BlockSpec((1, hp), const),
            pl.BlockSpec(memory_space=pltpu.MemorySpace.SMEM),
        ],
        out_specs=pl.BlockSpec((1, tile_b), lambda i: (0, i)),
        compiler_params=pltpu.CompilerParams(
            dimension_semantics=("parallel",),
            vmem_limit_bytes=vmem_limit),
        cost_estimate=cost,
    )(state, action, w1s, w1a, b1p, w2p, b2p, w3t, b3s)

    # (1, B) lane-dense slab -> (B, 1) column.
    return out.reshape(batch, 1)


def init_params(key, state_dim, hidden_dim, action_dim):
    """Deterministic PyTorch-style (uniform +/- 1/sqrt(fan_in)) initialization."""
    in_dim = state_dim + action_dim
    keys = jax.random.split(key, 6)

    def uniform(k, shape, fan_in):
        bound = 1.0 / jnp.sqrt(jnp.float32(fan_in))
        return jax.random.uniform(k, shape, jnp.float32, -bound, bound)

    # Weights stored as [in, out] (transposed relative to torch.nn.Linear.weight).
    w1 = uniform(keys[0], (in_dim, hidden_dim), in_dim)
    b1 = uniform(keys[1], (1, hidden_dim), in_dim)
    w2 = uniform(keys[2], (hidden_dim, hidden_dim), hidden_dim)
    b2 = uniform(keys[3], (1, hidden_dim), hidden_dim)
    w3 = uniform(keys[4], (hidden_dim, 1), hidden_dim)
    b3 = uniform(keys[5], (1, 1), hidden_dim)
    return (w1, b1, w2, b2, w3, b3)


def reference_forward(state, action, params):
    """Pure-JAX reference of the PyTorch module for correctness checking."""
    w1, b1, w2, b2, w3, b3 = params
    x = jnp.concatenate([state, action.astype(jnp.float32)], axis=1)
    x = jnp.maximum(x @ w1 + b1, 0.0)
    x = jnp.maximum(x @ w2 + b2, 0.0)
    return x @ w3 + b3


if __name__ == "__main__":
    state_dim, hidden_dim, action_dim = 16, 32, 4
    batch = 8

    key = jax.random.PRNGKey(0)
    k_params, k_state, k_action = jax.random.split(key, 3)

    params = init_params(k_params, state_dim, hidden_dim, action_dim)
    state = jax.random.normal(k_state, (batch, state_dim), jnp.float32)
    action = jax.random.randint(k_action, (batch, action_dim), 0, 5, jnp.int32)

    q_ref = reference_forward(state, action, params)

    # f32 path: numerically faithful to the torch float32 module.
    prepared_f32 = prepare_params(params, state_dim, compute_dtype=jnp.float32)
    q = jax.block_until_ready(action_value_critic_forward(state, action, prepared_f32))
    assert q.shape == (batch, 1)
    assert jnp.allclose(q, q_ref, atol=1e-4, rtol=1e-4)

    # bf16 MXU-operand path (f32 accumulation): the perf lever on v6e/v7x.
    prepared_bf16 = prepare_params(params, state_dim, compute_dtype=jnp.bfloat16)
    q_bf16 = jax.block_until_ready(
        action_value_critic_forward(state, action, prepared_bf16))
    assert q_bf16.shape == (batch, 1)
    assert jnp.allclose(q_bf16, q_ref, atol=5e-2, rtol=5e-2)

    print("KERNEL_OK")
</pallas_src>

<mosaic_0001>
module attributes {stable_mosaic.version = 11 : i64} {
  func.func @_critic_kernel(%arg0: i32, %arg1: memref<128x16xf32, #tpu.memory_space<vmem>>, %arg2: memref<128x4xi32, #tpu.memory_space<vmem>>, %arg3: memref<16x128xf32, #tpu.memory_space<vmem>>, %arg4: memref<4x128xf32, #tpu.memory_space<vmem>>, %arg5: memref<1x128xf32, #tpu.memory_space<vmem>>, %arg6: memref<128x128xf32, #tpu.memory_space<vmem>>, %arg7: memref<1x128xf32, #tpu.memory_space<vmem>>, %arg8: memref<1x128xf32, #tpu.memory_space<vmem>>, %arg9: memref<1xf32, #tpu.memory_space<smem>>, %arg10: memref<1x128xf32, #tpu.memory_space<vmem>>) attributes {dimension_semantics = [#tpu.dimension_semantics<parallel>], iteration_bounds = array<i64: 1>, scalar_prefetch = 0 : i64, scratch_operands = 0 : i64, tpu.core_type = #tpu.core_type<tc>, window_params = [{transform_indices = @transform_0, window_bounds = array<i64: 128, 16>}, {transform_indices = @transform_1, window_bounds = array<i64: 128, 4>}, {pipeline_mode = #tpu.pipeline_mode<synchronous>, transform_indices = @transform_2, window_bounds = array<i64: 16, 128>}, {pipeline_mode = #tpu.pipeline_mode<synchronous>, transform_indices = @transform_3, window_bounds = array<i64: 4, 128>}, {pipeline_mode = #tpu.pipeline_mode<synchronous>, transform_indices = @transform_4, window_bounds = array<i64: 1, 128>}, {pipeline_mode = #tpu.pipeline_mode<synchronous>, transform_indices = @transform_5, window_bounds = array<i64: 128, 128>}, {pipeline_mode = #tpu.pipeline_mode<synchronous>, transform_indices = @transform_6, window_bounds = array<i64: 1, 128>}, {pipeline_mode = #tpu.pipeline_mode<synchronous>, transform_indices = @transform_7, window_bounds = array<i64: 1, 128>}, {transform_indices = @transform_8, window_bounds = array<i64: 1>}, {transform_indices = @transform_9, window_bounds = array<i64: 1, 128>}]} {
    %c0 = arith.constant 0 : index
    %c0_0 = arith.constant 0 : index
    %0 = vector.load %arg1[%c0, %c0_0] : memref<128x16xf32, #tpu.memory_space<vmem>>, vector<128x16xf32>
    %c0_1 = arith.constant 0 : index
    %c0_2 = arith.constant 0 : index
    %1 = vector.load %arg2[%c0_1, %c0_2] : memref<128x4xi32, #tpu.memory_space<vmem>>, vector<128x4xi32>
    %2 = arith.sitofp %1 : vector<128x4xi32> to vector<128x4xf32>
    %c0_3 = arith.constant 0 : index
    %c0_4 = arith.constant 0 : index
    %3 = vector.load %arg3[%c0_3, %c0_4] : memref<16x128xf32, #tpu.memory_space<vmem>>, vector<16x128xf32>
    %cst = arith.constant dense<0.000000e+00> : vector<128x128xf32>
    %4 = tpu.matmul %0, %3, %cst {dimension_numbers = #tpu.dot_dimension_numbers<[1], [0], [0], [1], [0, 0, 1, 1], [], []>} : vector<128x16xf32>, vector<16x128xf32>, vector<128x128xf32> -> vector<128x128xf32>
    %c0_5 = arith.constant 0 : index
    %c0_6 = arith.constant 0 : index
    %5 = vector.load %arg4[%c0_5, %c0_6] : memref<4x128xf32, #tpu.memory_space<vmem>>, vector<4x128xf32>
    %cst_7 = arith.constant dense<0.000000e+00> : vector<128x128xf32>
    %6 = tpu.matmul %2, %5, %cst_7 {dimension_numbers = #tpu.dot_dimension_numbers<[1], [0], [0], [1], [0, 0, 1, 1], [], []>} : vector<128x4xf32>, vector<4x128xf32>, vector<128x128xf32> -> vector<128x128xf32>
    %7 = arith.addf %4, %6 : vector<128x128xf32>
    %c0_8 = arith.constant 0 : index
    %c0_9 = arith.constant 0 : index
    %8 = vector.load %arg5[%c0_8, %c0_9] : memref<1x128xf32, #tpu.memory_space<vmem>>, vector<1x128xf32>
    %9 = vector.broadcast %8 : vector<1x128xf32> to vector<128x128xf32>
    %10 = arith.addf %7, %9 : vector<128x128xf32>
    %cst_10 = arith.constant 0.000000e+00 : f32
    %11 = vector.broadcast %cst_10 : f32 to vector<128x128xf32>
    %12 = arith.maximumf %10, %11 : vector<128x128xf32>
    %c0_11 = arith.constant 0 : index
    %c0_12 = arith.constant 0 : index
    %13 = vector.load %arg6[%c0_11, %c0_12] : memref<128x128xf32, #tpu.memory_space<vmem>>, vector<128x128xf32>
    %cst_13 = arith.constant dense<0.000000e+00> : vector<128x128xf32>
    %14 = tpu.matmul %12, %13, %cst_13 {dimension_numbers = #tpu.dot_dimension_numbers<[1], [0], [0], [1], [0, 0, 1, 1], [], []>} : vector<128x128xf32>, vector<128x128xf32>, vector<128x128xf32> -> vector<128x128xf32>
    %c0_14 = arith.constant 0 : index
    %c0_15 = arith.constant 0 : index
    %15 = vector.load %arg7[%c0_14, %c0_15] : memref<1x128xf32, #tpu.memory_space<vmem>>, vector<1x128xf32>
    %16 = vector.broadcast %15 : vector<1x128xf32> to vector<128x128xf32>
    %17 = arith.addf %14, %16 : vector<128x128xf32>
    %cst_16 = arith.constant 0.000000e+00 : f32
    %18 = vector.broadcast %cst_16 : f32 to vector<128x128xf32>
    %19 = arith.maximumf %17, %18 : vector<128x128xf32>
    %c0_17 = arith.constant 0 : index
    %c0_18 = arith.constant 0 : index
    %20 = vector.load %arg8[%c0_17, %c0_18] : memref<1x128xf32, #tpu.memory_space<vmem>>, vector<1x128xf32>
    %cst_19 = arith.constant dense<0.000000e+00> : vector<1x128xf32>
    %21 = tpu.matmul %20, %19, %cst_19 {dimension_numbers = #tpu.dot_dimension_numbers<[1], [1], [0], [0], [0, 0, 1, 0], [], []>} : vector<1x128xf32>, vector<128x128xf32>, vector<1x128xf32> -> vector<1x128xf32>
    %c0_20 = arith.constant 0 : index
    %22 = memref.load %arg9[%c0_20] : memref<1xf32, #tpu.memory_space<smem>>
    %23 = vector.broadcast %22 : f32 to vector<1x128xf32>
    %24 = arith.addf %21, %23 : vector<1x128xf32>
    %c0_21 = arith.constant 0 : index
    %c0_22 = arith.constant 0 : index
    %25 = vector.load %arg10[%c0_21, %c0_22] : memref<1x128xf32, #tpu.memory_space<vmem>>, vector<1x128xf32>
    tpu.vector_store %arg10[%c0_21, %c0_22], %24 {strides = array<i32>} : memref<1x128xf32, #tpu.memory_space<vmem>>, vector<1x128xf32>,
    return
  }
  func.func @transform_0(%arg0: i32) -> (i32, i32) {
    %c0_i32 = arith.constant 0 : i32
    %c0_i32_0 = arith.constant 0 : i32
    return %arg0, %c0_i32 : i32, i32
  }
  func.func @transform_1(%arg0: i32) -> (i32, i32) {
    %c0_i32 = arith.constant 0 : i32
    %c0_i32_0 = arith.constant 0 : i32
    return %arg0, %c0_i32 : i32, i32
  }
  func.func @transform_2(%arg0: i32) -> (i32, i32) {
    %c0_i32 = arith.constant 0 : i32
    %c0_i32_0 = arith.constant 0 : i32
    %c0_i32_1 = arith.constant 0 : i32
    return %c0_i32, %c0_i32_0 : i32, i32
  }
  func.func @transform_3(%arg0: i32) -> (i32, i32) {
    %c0_i32 = arith.constant 0 : i32
    %c0_i32_0 = arith.constant 0 : i32
    %c0_i32_1 = arith.constant 0 : i32
    return %c0_i32, %c0_i32_0 : i32, i32
  }
  func.func @transform_4(%arg0: i32) -> (i32, i32) {
    %c0_i32 = arith.constant 0 : i32
    %c0_i32_0 = arith.constant 0 : i32
    %c0_i32_1 = arith.constant 0 : i32
    return %c0_i32, %c0_i32_0 : i32, i32
  }
  func.func @transform_5(%arg0: i32) -> (i32, i32) {
    %c0_i32 = arith.constant 0 : i32
    %c0_i32_0 = arith.constant 0 : i32
    %c0_i32_1 = arith.constant 0 : i32
    return %c0_i32, %c0_i32_0 : i32, i32
  }
  func.func @transform_6(%arg0: i32) -> (i32, i32) {
    %c0_i32 = arith.constant 0 : i32
    %c0_i32_0 = arith.constant 0 : i32
    %c0_i32_1 = arith.constant 0 : i32
    return %c0_i32, %c0_i32_0 : i32, i32
  }
  func.func @transform_7(%arg0: i32) -> (i32, i32) {
    %c0_i32 = arith.constant 0 : i32
    %c0_i32_0 = arith.constant 0 : i32
    %c0_i32_1 = arith.constant 0 : i32
    return %c0_i32, %c0_i32_0 : i32, i32
  }
  func.func @transform_8(%arg0: i32) -> i32 {
    %c0_i32 = arith.constant 0 : i32
    %c0_i32_0 = arith.constant 0 : i32
    return %c0_i32 : i32
  }
  func.func @transform_9(%arg0: i32) -> (i32, i32) {
    %c0_i32 = arith.constant 0 : i32
    %c0_i32_0 = arith.constant 0 : i32
    return %c0_i32, %arg0 : i32, i32
  }
}

</mosaic_0001>

<llo_original>
// kernel: tpu_custom_call.1
$region0: #{tpu_custom_call.1}
  #allocation0 [shape = 'u32[]', space=smem, size = 0x4, offset = 0x4, fixed_abs, tag = 'smem constant byte address 0x4 - core index']
  #allocation1 [shape = 'u32[144,128]{1,0:T(1,128)}', space=vmem, size = 0x12000, scoped, tag = 'internal scratch']
  #allocation2 [shape = 'f32[1]{0:T(128)S(6)}', space=smem, size = 0x200, scoped, tag = 'scoped memory for tpu_custom_call.1']
  %s0 = inlined_call_operand.hbm [shape: f32[8,16], index: 0, kind: input, shape index: {}]
  %s1 = inlined_call_operand.vmem [shape: s32[8,4], index: 1, kind: input, shape index: {}]
  %s2 = inlined_call_operand.vmem [shape: f32[16,128], index: 2, kind: input, shape index: {}]
  %s3 = inlined_call_operand.vmem [shape: f32[4,128], index: 3, kind: input, shape index: {}]
  %s4 = inlined_call_operand.vmem [shape: f32[1,128], index: 4, kind: input, shape index: {}]
  %s5 = inlined_call_operand.hbm [shape: f32[128,128], index: 5, kind: input, shape index: {}]
  %s6 = inlined_call_operand.vmem [shape: f32[1,128], index: 6, kind: input, shape index: {}]
  %s7 = inlined_call_operand.vmem [shape: f32[1,128], index: 7, kind: input, shape index: {}]
  %s8 = inlined_call_operand.<no memory space> [shape: f32[1], index: 8, kind: input, shape index: {}]
  %s9 = inlined_call_operand.hbm [shape: f32[1,8], index: 9, kind: output, shape index: {}]
  %s10 = sld [smem:[#allocation0]]
  $region54: #{tpu_custom_call.1} parent=0
    _
  %s12 = ssub.s32 1, %s10
  %s13 = scalar_select 0, %s12, %s10
  %14 = sst [smem:[#allocation2]] %s8
  $region1: #{tpu_custom_call.1} parent=0
    #allocation3 [shape = 'u8[65536]{0}', space=vmem, size = 0x10000, scoped, tag = 'input window, operand 0, single buffered']
    #allocation4 [shape = 's32[1]{0}', space=sflag, size = 0x4, scoped, tag = 'scoped memory for tpu_custom_call.1']
    #allocation5 [shape = 's32[1]{0}', space=sflag, size = 0x4, scoped, tag = 'scoped memory for tpu_custom_call.1']
    #allocation6 [shape = 'u8[65536]{0}', space=vmem, size = 0x10000, scoped, tag = 'input window, operand 5, single buffered']
    #allocation7 [shape = 's32[1]{0}', space=sflag, size = 0x4, scoped, tag = 'scoped memory for tpu_custom_call.1']
    #allocation8 [shape = 'u8[512]{0}', space=vmem, size = 0x400, scoped, tag = 'output window, operand 0, single buffered']
    %15 = vsyncpa [#allocation4], 0
    %16 = vsyncpa [#allocation7], 0
    %17 = vsyncpa [#allocation5], 0
    // Predicated region
    $region2: #{tpu_custom_call.1} parent=1 // pred_check
      _
    $region3: #{tpu_custom_call.1} parent=1 // pred_check_branch
      %19 = sbr.rel (0) target = $region5
    $region4: #{tpu_custom_call.1} parent=1 // pred_region
      %s21 = ssub.s32 2048, 128
      %22 = vsyncadd [#allocation4], %s21
      %s23 = sshll.u32 [#allocation3], 4
      %s24 = int_to_ptr.vmem [resolvable:$true] %s23
      %29 = dma.hbm_to_vmem [thread:$0]  %s0, 128, %s24, [#allocation4], 128, 128, 8
    $region5: #{tpu_custom_call.1} parent=1 // pred_fallthru
      _
    // Predicated region
    $region6: #{tpu_custom_call.1} parent=1 // pred_check
      _
    $region7: #{tpu_custom_call.1} parent=1 // pred_check_branch
      %31 = sbr.rel (0) target = $region9
    $region8: #{tpu_custom_call.1} parent=1 // pred_region
      _
    $region9: #{tpu_custom_call.1} parent=1 // pred_fallthru
      _
    // Predicated region
    $region10: #{tpu_custom_call.1} parent=1 // pred_check
      _
    $region11: #{tpu_custom_call.1} parent=1 // pred_check_branch
      %33 = sbr.rel (0) target = $region13
    $region12: #{tpu_custom_call.1} parent=1 // pred_region
      _
    $region13: #{tpu_custom_call.1} parent=1 // pred_fallthru
      _
    // Predicated region
    $region14: #{tpu_custom_call.1} parent=1 // pred_check
      _
    $region15: #{tpu_custom_call.1} parent=1 // pred_check_branch
      %35 = sbr.rel (0) target = $region17
    $region16: #{tpu_custom_call.1} parent=1 // pred_region
      _
    $region17: #{tpu_custom_call.1} parent=1 // pred_fallthru
      _
    // Predicated region
    $region18: #{tpu_custom_call.1} parent=1 // pred_check
      _
    $region19: #{tpu_custom_call.1} parent=1 // pred_check_branch
      %37 = sbr.rel (0) target = $region21
    $region20: #{tpu_custom_call.1} parent=1 // pred_region
      _
    $region21: #{tpu_custom_call.1} parent=1 // pred_fallthru
      _
    // Predicated region
    $region22: #{tpu_custom_call.1} parent=1 // pred_check
      _
    $region23: #{tpu_custom_call.1} parent=1 // pred_check_branch
      %39 = sbr.rel (0) target = $region25
    $region24: #{tpu_custom_call.1} parent=1 // pred_region
      %s41 = ssub.s32 2048, 2048
      %42 = vsyncadd [#allocation7], %s41
      %s43 = sshll.u32 [#allocation6], 4
      %s44 = int_to_ptr.vmem [resolvable:$true] %s43
      %49 = dma.hbm_to_vmem [thread:$0]  %s5, 2048, %s44, [#allocation7], 128, 128, 8
    $region25: #{tpu_custom_call.1} parent=1 // pred_fallthru
      _
    // Predicated region
    $region26: #{tpu_custom_call.1} parent=1 // pred_check
      _
    $region27: #{tpu_custom_call.1} parent=1 // pred_check_branch
      %51 = sbr.rel (0) target = $region29
    $region28: #{tpu_custom_call.1} parent=1 // pred_region
      _
    $region29: #{tpu_custom_call.1} parent=1 // pred_fallthru
      _
    // Predicated region
    $region30: #{tpu_custom_call.1} parent=1 // pred_check
      _
    $region31: #{tpu_custom_call.1} parent=1 // pred_check_branch
      %53 = sbr.rel (0) target = $region33
    $region32: #{tpu_custom_call.1} parent=1 // pred_region
      _
    $region33: #{tpu_custom_call.1} parent=1 // pred_fallthru
      _
    // Predicated region
    $region34: #{tpu_custom_call.1} parent=1 // pred_check
      _
    $region35: #{tpu_custom_call.1} parent=1 // pred_check_branch
      %55 = sbr.rel (0) target = $region37
    $region36: #{tpu_custom_call.1} parent=1 // pred_region
      _
    $region37: #{tpu_custom_call.1} parent=1 // pred_fallthru
      _
    // Predicated region
    $region38: #{tpu_custom_call.1} parent=1 // pred_check
      _
    $region39: #{tpu_custom_call.1} parent=1 // pred_check_branch
      %57 = sbr.rel (0) target = $region41
    $region40: #{tpu_custom_call.1} parent=1 // pred_region
      %58 = dma.done [#allocation4], 2048
    $region41: #{tpu_custom_call.1} parent=1 // pred_fallthru
      _
    // Predicated region
    $region42: #{tpu_custom_call.1} parent=1 // pred_check
      _
    $region43: #{tpu_custom_call.1} parent=1 // pred_check_branch
      %60 = sbr.rel (0) target = $region45
    $region44: #{tpu_custom_call.1} parent=1 // pred_region
      %61 = dma.done [#allocation7], 2048
    $region45: #{tpu_custom_call.1} parent=1 // pred_fallthru
      _
    %v62 = vld [vmem:[#allocation3] sm:$0xff]
    %v63 = vld [vmem:[#allocation3 + $0x8] sm:$0xff]
    %v64 = vld [vmem:[#allocation3 + $0x10] sm:$0xff]
    %v65 = vld [vmem:[#allocation3 + $0x18] sm:$0xff]
    %v66 = vld [vmem:[#allocation3 + $0x20] sm:$0xff]
    %v67 = vld [vmem:[#allocation3 + $0x28] sm:$0xff]
    %v68 = vld [vmem:[#allocation3 + $0x30] sm:$0xff]
    %v69 = vld [vmem:[#allocation3 + $0x38] sm:$0xff]
    %v70 = vld [vmem:[#allocation3 + $0x40] sm:$0xff]
    %v71 = vld [vmem:[#allocation3 + $0x48] sm:$0xff]
    %v72 = vld [vmem:[#allocation3 + $0x50] sm:$0xff]
    %v73 = vld [vmem:[#allocation3 + $0x58] sm:$0xff]
    %v74 = vld [vmem:[#allocation3 + $0x60] sm:$0xff]
    %v75 = vld [vmem:[#allocation3 + $0x68] sm:$0xff]
    %v76 = vld [vmem:[#allocation3 + $0x70] sm:$0xff]
    %v77 = vld [vmem:[#allocation3 + $0x78] sm:$0xff]
    %v78 = vld [vmem:[%s1] sm:$0xff]
    %v79 = vld [vmem:[%s1 + $0x8] sm:$0xff]
    %v80 = vld [vmem:[%s1 + $0x10] sm:$0xff]
    %v81 = vld [vmem:[%s1 + $0x18] sm:$0xff]
    %v82 = vld [vmem:[%s1 + $0x20] sm:$0xff]
    %v83 = vld [vmem:[%s1 + $0x28] sm:$0xff]
    %v84 = vld [vmem:[%s1 + $0x30] sm:$0xff]
    %v85 = vld [vmem:[%s1 + $0x38] sm:$0xff]
    %v86 = vld [vmem:[%s1 + $0x40] sm:$0xff]
    %v87 = vld [vmem:[%s1 + $0x48] sm:$0xff]
    %v88 = vld [vmem:[%s1 + $0x50] sm:$0xff]
    %v89 = vld [vmem:[%s1 + $0x58] sm:$0xff]
    %v90 = vld [vmem:[%s1 + $0x60] sm:$0xff]
    %v91 = vld [vmem:[%s1 + $0x68] sm:$0xff]
    %v92 = vld [vmem:[%s1 + $0x70] sm:$0xff]
    %v93 = vld [vmem:[%s1 + $0x78] sm:$0xff]
    %v94 = vcvt.s32.f32 %v78
    %v95 = vcvt.s32.f32 %v79
    %v96 = vcvt.s32.f32 %v80
    %v97 = vcvt.s32.f32 %v81
    %v98 = vcvt.s32.f32 %v82
    %v99 = vcvt.s32.f32 %v83
    %v100 = vcvt.s32.f32 %v84
    %v101 = vcvt.s32.f32 %v85
    %v102 = vcvt.s32.f32 %v86
    %v103 = vcvt.s32.f32 %v87
    %v104 = vcvt.s32.f32 %v88
    %v105 = vcvt.s32.f32 %v89
    %v106 = vcvt.s32.f32 %v90
    %v107 = vcvt.s32.f32 %v91
    %v108 = vcvt.s32.f32 %v92
    %v109 = vcvt.s32.f32 %v93
    %v110 = vld [vmem:[%s2] sm:$0xff]
    %v111 = vld [vmem:[%s2 + $0x8] sm:$0xff]
    %v112 = vld [vmem:[%s3] sm:$0xf]
    %vm113 = vcmask 31744
    %v115 = vsel %vm113, %v94, 0
    %v118 = vsel %vm113, %v95, 0
    %v121 = vsel %vm113, %v96, 0
    %v124 = vsel %vm113, %v97, 0
    %v127 = vsel %vm113, %v98, 0
    %v130 = vsel %vm113, %v99, 0
    %v133 = vsel %vm113, %v100, 0
    %v136 = vsel %vm113, %v101, 0
    %v139 = vsel %vm113, %v102, 0
    %v142 = vsel %vm113, %v103, 0
    %v145 = vsel %vm113, %v104, 0
    %v148 = vsel %vm113, %v105, 0
    %v151 = vsel %vm113, %v106, 0
    %v154 = vsel %vm113, %v107, 0
    %v157 = vsel %vm113, %v108, 0
    %v160 = vsel %vm113, %v109, 0
    %vm162 = vcmask 1043456
    %v164 = vsel %vm162, %v112, 0
    %166 = vmatprep.subr.mxu0 0.0
    %167 = vmatpush1.msra.mxu0 %v164
    %168 = vmatprep.subr.mxu0 0.0
    %169 = vmatpush1.msra.mxu0 0.0
    %170 = vmatprep.subr.mxu0 0.0
    %171 = vmatpush1.msra.mxu0 0.0
    %172 = vmatprep.subr.mxu0 0.0
    %173 = vmatpush1.msra.mxu0 0.0
    %174 = vmatprep.subr.mxu0 0.0
    %175 = vmatpush1.msra.mxu0 0.0
    %176 = vmatprep.subr.mxu0 0.0
    %177 = vmatpush1.msra.mxu0 0.0
    %178 = vmatprep.subr.mxu0 0.0
    %179 = vmatpush1.msra.mxu0 0.0
    %180 = vmatprep.subr.mxu0 0.0
    %181 = vmatpush1.msra.mxu0 0.0
    %182 = vmatprep.subr.mxu0 0.0
    %183 = vmatpush1.msra.mxu0 0.0
    %184 = vmatprep.subr.mxu0 0.0
    %185 = vmatpush1.msra.mxu0 0.0
    %186 = vmatprep.subr.mxu0 0.0
    %187 = vmatpush1.msra.mxu0 0.0
    %188 = vmatprep.subr.mxu0 0.0
    %189 = vmatpush1.msra.mxu0 0.0
    %190 = vmatprep.subr.mxu0 0.0
    %191 = vmatpush1.msra.mxu0 0.0
    %192 = vmatprep.subr.mxu0 0.0
    %193 = vmatpush1.msra.mxu0 0.0
    %194 = vmatprep.subr.mxu0 0.0
    %195 = vmatpush1.msra.mxu0 0.0
    %196 = vmatprep.subr.mxu0 0.0
    %197 = vmatpush1.msra.mxu0 0.0
    %198 = vmatprep.subr.mxu0 0.0
    %199 = vmatpush1.msra.mxu0 0.0
    %200 = vmatprep.subr.mxu0 0.0
    %201 = vmatpush1.msra.mxu0 0.0
    %202 = vmatprep.subr.mxu0 0.0
    %203 = vmatpush1.msra.mxu0 0.0
    %204 = vmatprep.subr.mxu0 0.0
    %205 = vmatpush1.msra.mxu0 0.0
    %206 = vmatprep.subr.mxu0 0.0
    %207 = vmatpush1.msra.mxu0 0.0
    %208 = vmatprep.subr.mxu0 0.0
    %209 = vmatpush1.msra.mxu0 0.0
    %210 = vmatprep.subr.mxu0 0.0
    %211 = vmatpush1.msra.mxu0 0.0
    %212 = vmatprep.subr.mxu0 0.0
    %213 = vmatpush1.msra.mxu0 0.0
    %214 = vmatprep.subr.mxu0 0.0
    %215 = vmatpush1.msra.mxu0 0.0
    %216 = vmatprep.subr.mxu0 0.0
    %217 = vmatpush1.msra.mxu0 0.0
    %218 = vmatprep.subr.mxu0 0.0
    %219 = vmatpush1.msra.mxu0 0.0
    %220 = vmatprep.subr.mxu0 0.0
    %221 = vmatpush1.msra.mxu0 0.0
    %222 = vmatprep.subr.mxu0 0.0
    %223 = vmatpush1.msra.mxu0 0.0
    %224 = vmatprep.subr.mxu0 0.0
    %225 = vmatpush1.msra.mxu0 0.0
    %226 = vmatprep.subr.mxu0 0.0
    %227 = vmatpush1.msra.mxu0 0.0
    %228 = vmatprep.subr.mxu0 0.0
    %229 = vmatpush1.msra.mxu0 0.0
    %230 = vmatprep.mubr.f32.mxu0 0.0
    %231 = vmatmul.mubr.f32.gmra.mrb[0].mxu0 %v115
    %v232 = vpop.f32.mrb[0].mxu0
    %v233 = vadd.f32 0.0, %v232
    %v234 = vpop.f32.mrb[0].mxu0
    %235 = vmatprep.mubr.f32.mxu0 0.0
    %236 = vmatmul.mubr.f32.gmra.mrb[0].mxu0 %v118
    %v237 = vpop.f32.mrb[0].mxu0
    %v238 = vadd.f32 0.0, %v237
    %v239 = vpop.f32.mrb[0].mxu0
    %240 = vmatprep.mubr.f32.mxu0 0.0
    %241 = vmatmul.mubr.f32.gmra.mrb[0].mxu0 %v121
    %v242 = vpop.f32.mrb[0].mxu0
    %v243 = vadd.f32 0.0, %v242
    %v244 = vpop.f32.mrb[0].mxu0
    %245 = vmatprep.mubr.f32.mxu0 0.0
    %246 = vmatmul.mubr.f32.gmra.mrb[0].mxu0 %v124
    %v247 = vpop.f32.mrb[0].mxu0
    %v248 = vadd.f32 0.0, %v247
    %v249 = vpop.f32.mrb[0].mxu0
    %250 = vmatprep.mubr.f32.mxu0 0.0
    %251 = vmatmul.mubr.f32.gmra.mrb[0].mxu0 %v127
    %v252 = vpop.f32.mrb[0].mxu0
    %v253 = vadd.f32 0.0, %v252
    %v254 = vpop.f32.mrb[0].mxu0
    %255 = vmatprep.mubr.f32.mxu0 0.0
    %256 = vmatmul.mubr.f32.gmra.mrb[0].mxu0 %v130
    %v257 = vpop.f32.mrb[0].mxu0
    %v258 = vadd.f32 0.0, %v257
    %v259 = vpop.f32.mrb[0].mxu0
    %260 = vmatprep.mubr.f32.mxu0 0.0
    %261 = vmatmul.mubr.f32.gmra.mrb[0].mxu0 %v133
    %v262 = vpop.f32.mrb[0].mxu0
    %v263 = vadd.f32 0.0, %v262
    %v264 = vpop.f32.mrb[0].mxu0
    %265 = vmatprep.mubr.f32.mxu0 0.0
    %266 = vmatmul.mubr.f32.gmra.mrb[0].mxu0 %v136
    %v267 = vpop.f32.mrb[0].mxu0
    %v268 = vadd.f32 0.0, %v267
    %v269 = vpop.f32.mrb[0].mxu0
    %270 = vmatprep.mubr.f32.mxu0 0.0
    %271 = vmatmul.mubr.f32.gmra.mrb[0].mxu0 %v139
    %v272 = vpop.f32.mrb[0].mxu0
    %v273 = vadd.f32 0.0, %v272
    %v274 = vpop.f32.mrb[0].mxu0
    %275 = vmatprep.mubr.f32.mxu0 0.0
    %276 = vmatmul.mubr.f32.gmra.mrb[0].mxu0 %v142
    %v277 = vpop.f32.mrb[0].mxu0
    %v278 = vadd.f32 0.0, %v277
    %v279 = vpop.f32.mrb[0].mxu0
    %280 = vmatprep.mubr.f32.mxu0 0.0
    %281 = vmatmul.mubr.f32.gmra.mrb[0].mxu0 %v145
    %v282 = vpop.f32.mrb[0].mxu0
    %v283 = vadd.f32 0.0, %v282
    %v284 = vpop.f32.mrb[0].mxu0
    %285 = vmatprep.mubr.f32.mxu0 0.0
    %286 = vmatmul.mubr.f32.gmra.mrb[0].mxu0 %v148
    %v287 = vpop.f32.mrb[0].mxu0
    %v288 = vadd.f32 0.0, %v287
    %v289 = vpop.f32.mrb[0].mxu0
    %290 = vmatprep.mubr.f32.mxu0 0.0
    %291 = vmatmul.mubr.f32.gmra.mrb[0].mxu0 %v151
    %v292 = vpop.f32.mrb[0].mxu0
    %v293 = vadd.f32 0.0, %v292
    %v294 = vpop.f32.mrb[0].mxu0
    %295 = vmatprep.mubr.f32.mxu0 0.0
    %296 = vmatmul.mubr.f32.gmra.mrb[0].mxu0 %v154
    %v297 = vpop.f32.mrb[0].mxu0
    %v298 = vadd.f32 0.0, %v297
    %v299 = vpop.f32.mrb[0].mxu0
    %300 = vmatprep.mubr.f32.mxu0 0.0
    %301 = vmatmul.mubr.f32.gmra.mrb[0].mxu0 %v157
    %v302 = vpop.f32.mrb[0].mxu0
    %v303 = vadd.f32 0.0, %v302
    %v304 = vpop.f32.mrb[0].mxu0
    %305 = vmatprep.mubr.f32.mxu0 0.0
    %306 = vmatmul.mubr.f32.gmra.mrb[0].mxu0 %v160
    %v307 = vpop.f32.mrb[0].mxu0
    %v308 = vadd.f32 0.0, %v307
    %v309 = vpop.f32.mrb[0].mxu0
    %310 = vdwg.mxu0
    %vm311 = vcmask 130048
    %v313 = vsel %vm311, %v62, 0
    %v316 = vsel %vm311, %v63, 0
    %v319 = vsel %vm311, %v64, 0
    %v322 = vsel %vm311, %v65, 0
    %v325 = vsel %vm311, %v66, 0
    %v328 = vsel %vm311, %v67, 0
    %v331 = vsel %vm311, %v68, 0
    %v334 = vsel %vm311, %v69, 0
    %v337 = vsel %vm311, %v70, 0
    %v340 = vsel %vm311, %v71, 0
    %v343 = vsel %vm311, %v72, 0
    %v346 = vsel %vm311, %v73, 0
    %v349 = vsel %vm311, %v74, 0
    %v352 = vsel %vm311, %v75, 0
    %v355 = vsel %vm311, %v76, 0
    %v358 = vsel %vm311, %v77, 0
    %360 = vmatprep.subr.mxu0 0.0
    %361 = vmatpush1.msra.mxu0 %v110
    %362 = vmatprep.subr.mxu0 0.0
    %363 = vmatpush1.msra.mxu0 %v111
    %364 = vmatprep.subr.mxu0 0.0
    %365 = vmatpush1.msra.mxu0 0.0
    %366 = vmatprep.subr.mxu0 0.0
    %367 = vmatpush1.msra.mxu0 0.0
    %368 = vmatprep.subr.mxu0 0.0
    %369 = vmatpush1.msra.mxu0 0.0
    %370 = vmatprep.subr.mxu0 0.0
    %371 = vmatpush1.msra.mxu0 0.0
    %372 = vmatprep.subr.mxu0 0.0
    %373 = vmatpush1.msra.mxu0 0.0
    %374 = vmatprep.subr.mxu0 0.0
    %375 = vmatpush1.msra.mxu0 0.0
    %376 = vmatprep.subr.mxu0 0.0
    %377 = vmatpush1.msra.mxu0 0.0
    %378 = vmatprep.subr.mxu0 0.0
    %379 = vmatpush1.msra.mxu0 0.0
    %380 = vmatprep.subr.mxu0 0.0
    %381 = vmatpush1.msra.mxu0 0.0
    %382 = vmatprep.subr.mxu0 0.0
    %383 = vmatpush1.msra.mxu0 0.0
    %384 = vmatprep.subr.mxu0 0.0
    %385 = vmatpush1.msra.mxu0 0.0
    %386 = vmatprep.subr.mxu0 0.0
    %387 = vmatpush1.msra.mxu0 0.0
    %388 = vmatprep.subr.mxu0 0.0
    %389 = vmatpush1.msra.mxu0 0.0
    %390 = vmatprep.subr.mxu0 0.0
    %391 = vmatpush1.msra.mxu0 0.0
    %392 = vmatprep.subr.mxu0 0.0
    %393 = vmatpush1.msra.mxu0 0.0
    %394 = vmatprep.subr.mxu0 0.0
    %395 = vmatpush1.msra.mxu0 0.0
    %396 = vmatprep.subr.mxu0 0.0
    %397 = vmatpush1.msra.mxu0 0.0
    %398 = vmatprep.subr.mxu0 0.0
    %399 = vmatpush1.msra.mxu0 0.0
    %400 = vmatprep.subr.mxu0 0.0
    %401 = vmatpush1.msra.mxu0 0.0
    %402 = vmatprep.subr.mxu0 0.0
    %403 = vmatpush1.msra.mxu0 0.0
    %404 = vmatprep.subr.mxu0 0.0
    %405 = vmatpush1.msra.mxu0 0.0
    %406 = vmatprep.subr.mxu0 0.0
    %407 = vmatpush1.msra.mxu0 0.0
    %408 = vmatprep.subr.mxu0 0.0
    %409 = vmatpush1.msra.mxu0 0.0
    %410 = vmatprep.subr.mxu0 0.0
    %411 = vmatpush1.msra.mxu0 0.0
    %412 = vmatprep.subr.mxu0 0.0
    %413 = vmatpush1.msra.mxu0 0.0
    %414 = vmatprep.subr.mxu0 0.0
    %415 = vmatpush1.msra.mxu0 0.0
    %416 = vmatprep.subr.mxu0 0.0
    %417 = vmatpush1.msra.mxu0 0.0
    %418 = vmatprep.subr.mxu0 0.0
    %419 = vmatpush1.msra.mxu0 0.0
    %420 = vmatprep.subr.mxu0 0.0
    %421 = vmatpush1.msra.mxu0 0.0
    %422 = vmatprep.subr.mxu0 0.0
    %423 = vmatpush1.msra.mxu0 0.0
    %424 = vmatprep.mubr.f32.mxu0 0.0
    %425 = vmatmul.mubr.f32.gmra.mrb[0].mxu0 %v313
    %v426 = vpop.f32.mrb[0].mxu0
    %v427 = vadd.f32 %v233, %v426
    %v428 = vpop.f32.mrb[0].mxu0
    %429 = vmatprep.mubr.f32.mxu0 0.0
    %430 = vmatmul.mubr.f32.gmra.mrb[0].mxu0 %v316
    %v431 = vpop.f32.mrb[0].mxu0
    %v432 = vadd.f32 %v238, %v431
    %v433 = vpop.f32.mrb[0].mxu0
    %434 = vmatprep.mubr.f32.mxu0 0.0
    %435 = vmatmul.mubr.f32.gmra.mrb[0].mxu0 %v319
    %v436 = vpop.f32.mrb[0].mxu0
    %v437 = vadd.f32 %v243, %v436
    %v438 = vpop.f32.mrb[0].mxu0
    %439 = vmatprep.mubr.f32.mxu0 0.0
    %440 = vmatmul.mubr.f32.gmra.mrb[0].mxu0 %v322
    %v441 = vpop.f32.mrb[0].mxu0
    %v442 = vadd.f32 %v248, %v441
    %v443 = vpop.f32.mrb[0].mxu0
    %444 = vmatprep.mubr.f32.mxu0 0.0
    %445 = vmatmul.mubr.f32.gmra.mrb[0].mxu0 %v325
    %v446 = vpop.f32.mrb[0].mxu0
    %v447 = vadd.f32 %v253, %v446
    %v448 = vpop.f32.mrb[0].mxu0
    %449 = vmatprep.mubr.f32.mxu0 0.0
    %450 = vmatmul.mubr.f32.gmra.mrb[0].mxu0 %v328
    %v451 = vpop.f32.mrb[0].mxu0
    %v452 = vadd.f32 %v258, %v451
    %v453 = vpop.f32.mrb[0].mxu0
    %454 = vmatprep.mubr.f32.mxu0 0.0
    %455 = vmatmul.mubr.f32.gmra.mrb[0].mxu0 %v331
    %v456 = vpop.f32.mrb[0].mxu0
    %v457 = vadd.f32 %v263, %v456
    %v458 = vpop.f32.mrb[0].mxu0
    %459 = vmatprep.mubr.f32.mxu0 0.0
    %460 = vmatmul.mubr.f32.gmra.mrb[0].mxu0 %v334
    %v461 = vpop.f32.mrb[0].mxu0
    %v462 = vadd.f32 %v268, %v461
    %v463 = vpop.f32.mrb[0].mxu0
    %464 = vmatprep.mubr.f32.mxu0 0.0
    %465 = vmatmul.mubr.f32.gmra.mrb[0].mxu0 %v337
    %v466 = vpop.f32.mrb[0].mxu0
    %v467 = vadd.f32 %v273, %v466
    %v468 = vpop.f32.mrb[0].mxu0
    %469 = vmatprep.mubr.f32.mxu0 0.0
    %470 = vmatmul.mubr.f32.gmra.mrb[0].mxu0 %v340
    %v471 = vpop.f32.mrb[0].mxu0
    %v472 = vadd.f32 %v278, %v471
    %v473 = vpop.f32.mrb[0].mxu0
    %474 = vmatprep.mubr.f32.mxu0 0.0
    %475 = vmatmul.mubr.f32.gmra.mrb[0].mxu0 %v343
    %v476 = vpop.f32.mrb[0].mxu0
    %v477 = vadd.f32 %v283, %v476
    %v478 = vpop.f32.mrb[0].mxu0
    %479 = vmatprep.mubr.f32.mxu0 0.0
    %480 = vmatmul.mubr.f32.gmra.mrb[0].mxu0 %v346
    %v481 = vpop.f32.mrb[0].mxu0
    %v482 = vadd.f32 %v288, %v481
    %v483 = vpop.f32.mrb[0].mxu0
    %484 = vmatprep.mubr.f32.mxu0 0.0
    %485 = vmatmul.mubr.f32.gmra.mrb[0].mxu0 %v349
    %v486 = vpop.f32.mrb[0].mxu0
    %v487 = vadd.f32 %v293, %v486
    %v488 = vpop.f32.mrb[0].mxu0
    %489 = vmatprep.mubr.f32.mxu0 0.0
    %490 = vmatmul.mubr.f32.gmra.mrb[0].mxu0 %v352
    %v491 = vpop.f32.mrb[0].mxu0
    %v492 = vadd.f32 %v298, %v491
    %v493 = vpop.f32.mrb[0].mxu0
    %494 = vmatprep.mubr.f32.mxu0 0.0
    %495 = vmatmul.mubr.f32.gmra.mrb[0].mxu0 %v355
    %v496 = vpop.f32.mrb[0].mxu0
    %v497 = vadd.f32 %v303, %v496
    %v498 = vpop.f32.mrb[0].mxu0
    %499 = vmatprep.mubr.f32.mxu0 0.0
    %500 = vmatmul.mubr.f32.gmra.mrb[0].mxu0 %v358
    %v501 = vpop.f32.mrb[0].mxu0
    %v502 = vadd.f32 %v308, %v501
    %v503 = vpop.f32.mrb[0].mxu0
    %504 = vdwg.mxu0
    %v505 = vld [vmem:[%s4] sm:$0x1]
    %v507 = vlaneseq
    %v508 = vshrl.u32 %v507, 7
    %v509 = vsub.s32 0, %v508
    %v510 = vrot.slane %v505, %v509
    %v512 = vadd.f32 %v427, %v510
    %v513 = vadd.f32 %v432, %v510
    %v514 = vadd.f32 %v437, %v510
    %v515 = vadd.f32 %v442, %v510
    %v516 = vadd.f32 %v447, %v510
    %v517 = vadd.f32 %v452, %v510
    %v518 = vadd.f32 %v457, %v510
    %v519 = vadd.f32 %v462, %v510
    %v520 = vadd.f32 %v467, %v510
    %v521 = vadd.f32 %v472, %v510
    %v522 = vadd.f32 %v477, %v510
    %v523 = vadd.f32 %v482, %v510
    %v524 = vadd.f32 %v487, %v510
    %v525 = vadd.f32 %v492, %v510
    %v526 = vadd.f32 %v497, %v510
    %v527 = vadd.f32 %v502, %v510
    %v528 = vmax.f32 %v512, 0.0
    %v529 = vmax.f32 %v513, 0.0
    %v530 = vmax.f32 %v514, 0.0
    %v531 = vmax.f32 %v515, 0.0
    %v532 = vmax.f32 %v516, 0.0
    %v533 = vmax.f32 %v517, 0.0
    %v534 = vmax.f32 %v518, 0.0
    %v535 = vmax.f32 %v519, 0.0
    %v536 = vmax.f32 %v520, 0.0
    %v537 = vmax.f32 %v521, 0.0
    %v538 = vmax.f32 %v522, 0.0
    %v539 = vmax.f32 %v523, 0.0
    %v540 = vmax.f32 %v524, 0.0
    %v541 = vmax.f32 %v525, 0.0
    %v542 = vmax.f32 %v526, 0.0
    %v543 = vmax.f32 %v527, 0.0
    %v544 = vld [vmem:[#allocation6] sm:$0xff]
    %v545 = vld [vmem:[#allocation6 + $0x8] sm:$0xff]
    %v546 = vld [vmem:[#allocation6 + $0x10] sm:$0xff]
    %v547 = vld [vmem:[#allocation6 + $0x18] sm:$0xff]
    %v548 = vld [vmem:[#allocation6 + $0x20] sm:$0xff]
    %v549 = vld [vmem:[#allocation6 + $0x28] sm:$0xff]
    %v550 = vld [vmem:[#allocation6 + $0x30] sm:$0xff]
    %v551 = vld [vmem:[#allocation6 + $0x38] sm:$0xff]
    %v552 = vld [vmem:[#allocation6 + $0x40] sm:$0xff]
    %v553 = vld [vmem:[#allocation6 + $0x48] sm:$0xff]
    %v554 = vld [vmem:[#allocation6 + $0x50] sm:$0xff]
    %v555 = vld [vmem:[#allocation6 + $0x58] sm:$0xff]
    %v556 = vld [vmem:[#allocation6 + $0x60] sm:$0xff]
    %v557 = vld [vmem:[#allocation6 + $0x68] sm:$0xff]
    %v558 = vld [vmem:[#allocation6 + $0x70] sm:$0xff]
    %v559 = vld [vmem:[#allocation6 + $0x78] sm:$0xff]
    %v560 = vld [vmem:[%s6] sm:$0x1]
    %v562 = vlaneseq
    %v563 = vshrl.u32 %v562, 7
    %v564 = vsub.s32 0, %v563
    %v565 = vrot.slane %v560, %v564
    %567 = vmatprep.subr.mxu0 0.0
    %568 = vmatpush1.msra.mxu0 %v544
    %569 = vmatprep.subr.mxu0 0.0
    %570 = vmatpush1.msra.mxu0 %v545
    %571 = vmatprep.subr.mxu0 0.0
    %572 = vmatpush1.msra.mxu0 %v546
    %573 = vmatprep.subr.mxu0 0.0
    %574 = vmatpush1.msra.mxu0 %v547
    %575 = vmatprep.subr.mxu0 0.0
    %576 = vmatpush1.msra.mxu0 %v548
    %577 = vmatprep.subr.mxu0 0.0
    %578 = vmatpush1.msra.mxu0 %v549
    %579 = vmatprep.subr.mxu0 0.0
    %580 = vmatpush1.msra.mxu0 %v550
    %581 = vmatprep.subr.mxu0 0.0
    %582 = vmatpush1.msra.mxu0 %v551
    %583 = vmatprep.subr.mxu0 0.0
    %584 = vmatpush1.msra.mxu0 %v552
    %585 = vmatprep.subr.mxu0 0.0
    %586 = vmatpush1.msra.mxu0 %v553
    %587 = vmatprep.subr.mxu0 0.0
    %588 = vmatpush1.msra.mxu0 %v554
    %589 = vmatprep.subr.mxu0 0.0
    %590 = vmatpush1.msra.mxu0 %v555
    %591 = vmatprep.subr.mxu0 0.0
    %592 = vmatpush1.msra.mxu0 %v556
    %593 = vmatprep.subr.mxu0 0.0
    %594 = vmatpush1.msra.mxu0 %v557
    %595 = vmatprep.subr.mxu0 0.0
    %596 = vmatpush1.msra.mxu0 %v558
    %597 = vmatprep.subr.mxu0 0.0
    %598 = vmatpush1.msra.mxu0 %v559
    %599 = vmatprep.subr.mxu0 0.0
    %600 = vmatpush1.msra.mxu0 0.0
    %601 = vmatprep.subr.mxu0 0.0
    %602 = vmatpush1.msra.mxu0 0.0
    %603 = vmatprep.subr.mxu0 0.0
    %604 = vmatpush1.msra.mxu0 0.0
    %605 = vmatprep.subr.mxu0 0.0
    %606 = vmatpush1.msra.mxu0 0.0
    %607 = vmatprep.subr.mxu0 0.0
    %608 = vmatpush1.msra.mxu0 0.0
    %609 = vmatprep.subr.mxu0 0.0
    %610 = vmatpush1.msra.mxu0 0.0
    %611 = vmatprep.subr.mxu0 0.0
    %612 = vmatpush1.msra.mxu0 0.0
    %613 = vmatprep.subr.mxu0 0.0
    %614 = vmatpush1.msra.mxu0 0.0
    %615 = vmatprep.subr.mxu0 0.0
    %616 = vmatpush1.msra.mxu0 0.0
    %617 = vmatprep.subr.mxu0 0.0
    %618 = vmatpush1.msra.mxu0 0.0
    %619 = vmatprep.subr.mxu0 0.0
    %620 = vmatpush1.msra.mxu0 0.0
    %621 = vmatprep.subr.mxu0 0.0
    %622 = vmatpush1.msra.mxu0 0.0
    %623 = vmatprep.subr.mxu0 0.0
    %624 = vmatpush1.msra.mxu0 0.0
    %625 = vmatprep.subr.mxu0 0.0
    %626 = vmatpush1.msra.mxu0 0.0
    %627 = vmatprep.subr.mxu0 0.0
    %628 = vmatpush1.msra.mxu0 0.0
    %629 = vmatprep.subr.mxu0 0.0
    %630 = vmatpush1.msra.mxu0 0.0
    %631 = vmatprep.mubr.f32.mxu0 0.0
    %632 = vmatmul.mubr.f32.gmra.mrb[0].mxu0 %v528
    %v633 = vpop.f32.mrb[0].mxu0
    %v634 = vadd.f32 %v565, %v633
    %v635 = vpop.f32.mrb[0].mxu0
    %636 = vmatprep.mubr.f32.mxu0 0.0
    %637 = vmatmul.mubr.f32.gmra.mrb[0].mxu0 %v529
    %v638 = vpop.f32.mrb[0].mxu0
    %v639 = vadd.f32 %v565, %v638
    %v640 = vpop.f32.mrb[0].mxu0
    %641 = vmatprep.mubr.f32.mxu0 0.0
    %642 = vmatmul.mubr.f32.gmra.mrb[0].mxu0 %v530
    %v643 = vpop.f32.mrb[0].mxu0
    %v644 = vadd.f32 %v565, %v643
    %v645 = vpop.f32.mrb[0].mxu0
    %646 = vmatprep.mubr.f32.mxu0 0.0
    %647 = vmatmul.mubr.f32.gmra.mrb[0].mxu0 %v531
    %v648 = vpop.f32.mrb[0].mxu0
    %v649 = vadd.f32 %v565, %v648
    %v650 = vpop.f32.mrb[0].mxu0
    %651 = vmatprep.mubr.f32.mxu0 0.0
    %652 = vmatmul.mubr.f32.gmra.mrb[0].mxu0 %v532
    %v653 = vpop.f32.mrb[0].mxu0
    %v654 = vadd.f32 %v565, %v653
    %v655 = vpop.f32.mrb[0].mxu0
    %656 = vmatprep.mubr.f32.mxu0 0.0
    %657 = vmatmul.mubr.f32.gmra.mrb[0].mxu0 %v533
    %v658 = vpop.f32.mrb[0].mxu0
    %v659 = vadd.f32 %v565, %v658
    %v660 = vpop.f32.mrb[0].mxu0
    %661 = vmatprep.mubr.f32.mxu0 0.0
    %662 = vmatmul.mubr.f32.gmra.mrb[0].mxu0 %v534
    %v663 = vpop.f32.mrb[0].mxu0
    %v664 = vadd.f32 %v565, %v663
    %v665 = vpop.f32.mrb[0].mxu0
    %666 = vmatprep.mubr.f32.mxu0 0.0
    %667 = vmatmul.mubr.f32.gmra.mrb[0].mxu0 %v535
    %v668 = vpop.f32.mrb[0].mxu0
    %v669 = vadd.f32 %v565, %v668
    %v670 = vpop.f32.mrb[0].mxu0
    %671 = vmatprep.mubr.f32.mxu0 0.0
    %672 = vmatmul.mubr.f32.gmra.mrb[0].mxu0 %v536
    %v673 = vpop.f32.mrb[0].mxu0
    %v674 = vadd.f32 %v565, %v673
    %v675 = vpop.f32.mrb[0].mxu0
    %676 = vmatprep.mubr.f32.mxu0 0.0
    %677 = vmatmul.mubr.f32.gmra.mrb[0].mxu0 %v537
    %v678 = vpop.f32.mrb[0].mxu0
    %v679 = vadd.f32 %v565, %v678
    %v680 = vpop.f32.mrb[0].mxu0
    %681 = vmatprep.mubr.f32.mxu0 0.0
    %682 = vmatmul.mubr.f32.gmra.mrb[0].mxu0 %v538
    %v683 = vpop.f32.mrb[0].mxu0
    %v684 = vadd.f32 %v565, %v683
    %v685 = vpop.f32.mrb[0].mxu0
    %686 = vmatprep.mubr.f32.mxu0 0.0
    %687 = vmatmul.mubr.f32.gmra.mrb[0].mxu0 %v539
    %v688 = vpop.f32.mrb[0].mxu0
    %v689 = vadd.f32 %v565, %v688
    %v690 = vpop.f32.mrb[0].mxu0
    %691 = vmatprep.mubr.f32.mxu0 0.0
    %692 = vmatmul.mubr.f32.gmra.mrb[0].mxu0 %v540
    %v693 = vpop.f32.mrb[0].mxu0
    %v694 = vadd.f32 %v565, %v693
    %v695 = vpop.f32.mrb[0].mxu0
    %696 = vmatprep.mubr.f32.mxu0 0.0
    %697 = vmatmul.mubr.f32.gmra.mrb[0].mxu0 %v541
    %v698 = vpop.f32.mrb[0].mxu0
    %v699 = vadd.f32 %v565, %v698
    %v700 = vpop.f32.mrb[0].mxu0
    %701 = vmatprep.mubr.f32.mxu0 0.0
    %702 = vmatmul.mubr.f32.gmra.mrb[0].mxu0 %v542
    %v703 = vpop.f32.mrb[0].mxu0
    %v704 = vadd.f32 %v565, %v703
    %v705 = vpop.f32.mrb[0].mxu0
    %706 = vmatprep.mubr.f32.mxu0 0.0
    %707 = vmatmul.mubr.f32.gmra.mrb[0].mxu0 %v543
    %v708 = vpop.f32.mrb[0].mxu0
    %v709 = vadd.f32 %v565, %v708
    %v710 = vpop.f32.mrb[0].mxu0
    %711 = vdwg.mxu0
    %v712 = vmax.f32 %v634, 0.0
    %v713 = vmax.f32 %v639, 0.0
    %v714 = vmax.f32 %v644, 0.0
    %v715 = vmax.f32 %v649, 0.0
    %v716 = vmax.f32 %v654, 0.0
    %v717 = vmax.f32 %v659, 0.0
    %v718 = vmax.f32 %v664, 0.0
    %v719 = vmax.f32 %v669, 0.0
    %v720 = vmax.f32 %v674, 0.0
    %v721 = vmax.f32 %v679, 0.0
    %v722 = vmax.f32 %v684, 0.0
    %v723 = vmax.f32 %v689, 0.0
    %v724 = vmax.f32 %v694, 0.0
    %v725 = vmax.f32 %v699, 0.0
    %v726 = vmax.f32 %v704, 0.0
    %v727 = vmax.f32 %v709, 0.0
    %v728 = vld [vmem:[%s7] sm:$0x1]
    %s729 = sld [smem:[#allocation2]]
    %v730 = vstv %s729
    %731 = vmatprep.subr.mxu0 0.0
    %732 = vmatpush1.xpose.msra.mxu0 %v712
    %733 = vmatprep.subr.mxu0 0.0
    %734 = vmatpush1.xpose.msra.mxu0 %v713
    %735 = vmatprep.subr.mxu0 0.0
    %736 = vmatpush1.xpose.msra.mxu0 %v714
    %737 = vmatprep.subr.mxu0 0.0
    %738 = vmatpush1.xpose.msra.mxu0 %v715
    %739 = vmatprep.subr.mxu0 0.0
    %740 = vmatpush1.xpose.msra.mxu0 %v716
    %741 = vmatprep.subr.mxu0 0.0
    %742 = vmatpush1.xpose.msra.mxu0 %v717
    %743 = vmatprep.subr.mxu0 0.0
    %744 = vmatpush1.xpose.msra.mxu0 %v718
    %745 = vmatprep.subr.mxu0 0.0
    %746 = vmatpush1.xpose.msra.mxu0 %v719
    %747 = vmatprep.subr.mxu0 0.0
    %748 = vmatpush1.xpose.msra.mxu0 %v720
    %749 = vmatprep.subr.mxu0 0.0
    %750 = vmatpush1.xpose.msra.mxu0 %v721
    %751 = vmatprep.subr.mxu0 0.0
    %752 = vmatpush1.xpose.msra.mxu0 %v722
    %753 = vmatprep.subr.mxu0 0.0
    %754 = vmatpush1.xpose.msra.mxu0 %v723
    %755 = vmatprep.subr.mxu0 0.0
    %756 = vmatpush1.xpose.msra.mxu0 %v724
    %757 = vmatprep.subr.mxu0 0.0
    %758 = vmatpush1.xpose.msra.mxu0 %v725
    %759 = vmatprep.subr.mxu0 0.0
    %760 = vmatpush1.xpose.msra.mxu0 %v726
    %761 = vmatprep.subr.mxu0 0.0
    %762 = vmatpush1.xpose.msra.mxu0 %v727
    %763 = vmatprep.subr.mxu0 0.0
    %764 = vmatpush1.xpose.msra.mxu0 0.0
    %765 = vmatprep.subr.mxu0 0.0
    %766 = vmatpush1.xpose.msra.mxu0 0.0
    %767 = vmatprep.subr.mxu0 0.0
    %768 = vmatpush1.xpose.msra.mxu0 0.0
    %769 = vmatprep.subr.mxu0 0.0
    %770 = vmatpush1.xpose.msra.mxu0 0.0
    %771 = vmatprep.subr.mxu0 0.0
    %772 = vmatpush1.xpose.msra.mxu0 0.0
    %773 = vmatprep.subr.mxu0 0.0
    %774 = vmatpush1.xpose.msra.mxu0 0.0
    %775 = vmatprep.subr.mxu0 0.0
    %776 = vmatpush1.xpose.msra.mxu0 0.0
    %777 = vmatprep.subr.mxu0 0.0
    %778 = vmatpush1.xpose.msra.mxu0 0.0
    %779 = vmatprep.subr.mxu0 0.0
    %780 = vmatpush1.xpose.msra.mxu0 0.0
    %781 = vmatprep.subr.mxu0 0.0
    %782 = vmatpush1.xpose.msra.mxu0 0.0
    %783 = vmatprep.subr.mxu0 0.0
    %784 = vmatpush1.xpose.msra.mxu0 0.0
    %785 = vmatprep.subr.mxu0 0.0
    %786 = vmatpush1.xpose.msra.mxu0 0.0
    %787 = vmatprep.subr.mxu0 0.0
    %788 = vmatpush1.xpose.msra.mxu0 0.0
    %789 = vmatprep.subr.mxu0 0.0
    %790 = vmatpush1.xpose.msra.mxu0 0.0
    %791 = vmatprep.subr.mxu0 0.0
    %792 = vmatpush1.xpose.msra.mxu0 0.0
    %793 = vmatprep.subr.mxu0 0.0
    %794 = vmatpush1.xpose.msra.mxu0 0.0
    %795 = vmatprep.mubr.f32.mxu0 0.0
    %796 = vmatmul.mubr.f32.gmra.mrb[0].mxu0 %v728
    %v797 = vpop.f32.mrb[0].mxu0
    %v798 = vadd.f32 %v730, %v797
    %v799 = vpop.f32.mrb[0].mxu0
    %800 = vdwg.mxu0
    %801 = vst [vmem:[#allocation8] sm:$0x1] %v798
    // Predicated region
    $region46: #{tpu_custom_call.1} parent=1 // pred_check
      _
    $region47: #{tpu_custom_call.1} parent=1 // pred_check_branch
      %803 = sbr.rel (0) target = $region49
    $region48: #{tpu_custom_call.1} parent=1 // pred_region
      %s805 = ssub.s32 16, 16
      %806 = vsyncadd [#allocation5], %s805
      %s808 = sshll.u32 [#allocation8], 4
      %s809 = int_to_ptr.vmem [resolvable:$true] %s808
      %811 = dma.vmem_to_hbm [thread:$0]  %s809, 16, %s9, [#allocation5]
    $region49: #{tpu_custom_call.1} parent=1 // pred_fallthru
      _
    // Predicated region
    $region50: #{tpu_custom_call.1} parent=1 // pred_check
      _
    $region51: #{tpu_custom_call.1} parent=1 // pred_check_branch
      %813 = sbr.rel (0) target = $region53
    $region52: #{tpu_custom_call.1} parent=1 // pred_region
      %814 = dma.done [#allocation5], 16
    $region53: #{tpu_custom_call.1} parent=1 // pred_fallthru
      _
    %815 = vsyncpa [#allocation4], 1
    %816 = vsyncpa [#allocation7], 1
    %817 = vsyncpa [#allocation5], 1

</llo_original>
